<compile_context>
chip_gen: v7x
topology: tpu7x:2x2x1
jax: 0.10.0
libtpu: 0.0.40
codegen_flags: <defaults>
</compile_context>

<pallas_src>
import functools

import numpy as np

import jax
import jax.numpy as jnp
from jax.experimental import pallas as pl
from jax.experimental.pallas import tpu as pltpu

_LANES = 128
_MAX_BLOCK_ROWS = 512      # 512 x 128 f32 tile = 256 KiB; ~85% of HBM roofline per docs
_PAD_MAG = 1e4             # exp(-1e4) == 0.0, so padded elements add exactly 0 loss


def _round_up(n: int, m: int) -> int:
    return ((n + m - 1) // m) * m


def _bce_weighted_sum_kernel(w_ref, x_ref, out_ref, *, is_real: bool):
    """Process one (block_rows, 128) tile of concatenated logits.

    Accumulates  weight_tile * BCEWithLogits(x, const_target)  elementwise into the
    resident (1, block_rows, 128) output block (VPU adds only; no per-tile XLU
    reduce — the single cross-lane reduction is done once in the wrapper).
    """
    c = pl.program_id(0)   # which half of the element range (parallel / per-TC on v7x)
    i = pl.program_id(1)   # tile within the half (reduction axis, "arbitrary")

    @pl.when(i == 0)
    def _():
        out_ref[...] = jnp.zeros_like(out_ref)

    x = x_ref[...].astype(jnp.float32)
    # Constant target -> specialize (numerically stable softplus):
    #   BCE(x, 1) = softplus(-x) = max(-x, 0) + log1p(exp(-|x|))
    #   BCE(x, 0) = softplus( x) = max( x, 0) + log1p(exp(-|x|))
    z = -x if is_real else x
    loss = jnp.maximum(z, 0.0) + jnp.log1p(jnp.exp(-jnp.abs(x)))

    tile = c * pl.num_programs(1) + i
    w = w_ref[tile]                                 # scalar: 1 / (count_scale * num_scale)
    out_ref[...] += (loss * w)[None, :, :]


def multiscale_vanilla_gan_loss(feats, is_real: bool, is_disc: bool = False,
                                loss_weight: float = 1.0) -> jax.Array:
    """JAX/Pallas equivalent of MultiscaleVanillaGANLoss.forward."""
    assert isinstance(feats, (list, tuple)), "feats must be a list/tuple of logit tensors"
    num_scale = len(feats)
    if num_scale == 0:
        raise ValueError("MultiscaleVanillaGANLoss: empty feature list")

    # Lane-aligned block: shrink for tiny inputs, cap for big ones.
    max_rows_needed = max(_round_up(pl.cdiv(int(f.size), _LANES), 8) for f in feats)
    block_rows = min(_MAX_BLOCK_ROWS, max_rows_needed)
    block_elems = block_rows * _LANES

    common_dtype = jnp.result_type(*[f.dtype for f in feats])
    pad_mag = _PAD_MAG if is_real else -_PAD_MAG

    flats = []
    weights = []               # host-side numpy -> becomes a compile-time constant
    for f in feats:
        count = int(f.size)
        flat = f.reshape(-1).astype(common_dtype)
        padded = _round_up(count, block_elems)
        if padded > count:
            flat = jnp.pad(flat, (0, padded - count), constant_values=pad_mag)
        n_tiles = padded // block_elems
        flats.append(flat)
        weights.append(np.full((n_tiles,), 1.0 / (count * num_scale), np.float32))

    total_tiles = sum(int(w.shape[0]) for w in weights)
    # Two-way split over the leading "parallel" axis (uses both TCs on v7x).
    tiles_half = pl.cdiv(total_tiles, 2)
    extra = 2 * tiles_half - total_tiles
    if extra:
        flats.append(jnp.full((extra * block_elems,), pad_mag, dtype=common_dtype))
        weights.append(np.zeros((extra,), np.float32))

    x_all = jnp.concatenate(flats).reshape(2 * tiles_half * block_rows, _LANES)
    w_all = jnp.asarray(np.concatenate(weights))

    kernel = functools.partial(_bce_weighted_sum_kernel, is_real=bool(is_real))
    partials = pl.pallas_call(
        kernel,
        out_shape=jax.ShapeDtypeStruct((2, block_rows, _LANES), jnp.float32),
        grid_spec=pltpu.PrefetchScalarGridSpec(
            num_scalar_prefetch=1,
            grid=(2, tiles_half),
            in_specs=[pl.BlockSpec((block_rows, _LANES),
                                   lambda c, i, w: (c * tiles_half + i, 0))],
            out_specs=pl.BlockSpec((1, block_rows, _LANES),
                                   lambda c, i, w: (c, 0, 0)),
        ),
        compiler_params=pltpu.CompilerParams(
            dimension_semantics=("parallel", "arbitrary"),
            vmem_limit_bytes=32 * 1024 * 1024,
        ),
    )(w_all, x_all)

    # Single cross-lane reduce of the (2, block_rows, 128) partials, done once here.
    loss = jnp.sum(partials).astype(jnp.float32)
    return loss if is_disc else jnp.float32(loss_weight) * loss


def _reference_loss(feats, is_real: bool, is_disc: bool, loss_weight: float):
    """Pure-JAX reference for verification."""
    num_scale = len(feats)
    total = 0.0
    for feat in feats:
        x = feat.astype(jnp.float32)
        per_elem = jax.nn.softplus(-x) if is_real else jax.nn.softplus(x)
        total = total + jnp.mean(per_elem)
    loss = total / num_scale
    return loss if is_disc else loss_weight * loss


if __name__ == "__main__":
    key = jax.random.PRNGKey(0)
    loss_weight = 0.5

    # Multiscale discriminator logits (NCHW), e.g. a 3-scale PatchGAN output.
    shapes = [(2, 4, 16, 16), (2, 4, 8, 8), (2, 4, 4, 4)]
    keys = jax.random.split(key, len(shapes))
    feats = [jax.random.normal(k, s, dtype=jnp.float32) for k, s in zip(keys, shapes)]

    # Generator-style call (is_real=True, is_disc=False -> scaled by loss_weight).
    out_g = multiscale_vanilla_gan_loss(feats, is_real=True, is_disc=False,
                                        loss_weight=loss_weight)
    out_g = jax.block_until_ready(out_g)
    ref_g = _reference_loss(feats, is_real=True, is_disc=False, loss_weight=loss_weight)
    assert jnp.allclose(out_g, ref_g, rtol=1e-5, atol=1e-6), (out_g, ref_g)

    # Discriminator-style call on "fake" logits (is_real=False, is_disc=True).
    out_d = multiscale_vanilla_gan_loss(feats, is_real=False, is_disc=True,
                                        loss_weight=loss_weight)
    out_d = jax.block_until_ready(out_d)
    ref_d = _reference_loss(feats, is_real=False, is_disc=True, loss_weight=loss_weight)
    assert jnp.allclose(out_d, ref_d, rtol=1e-5, atol=1e-6), (out_d, ref_d)

    # Odd, lane-unaligned shapes (exercises sentinel padding + tile-weight masking).
    odd_shapes = [(3, 1, 13, 9), (2, 4, 8, 8)]
    odd_keys = jax.random.split(jax.random.PRNGKey(1), len(odd_shapes))
    odd_feats = [jax.random.normal(k, s, dtype=jnp.float32)
                 for k, s in zip(odd_keys, odd_shapes)]
    out_o = multiscale_vanilla_gan_loss(odd_feats, is_real=False, is_disc=False,
                                        loss_weight=loss_weight)
    out_o = jax.block_until_ready(out_o)
    ref_o = _reference_loss(odd_feats, is_real=False, is_disc=False,
                            loss_weight=loss_weight)
    assert jnp.allclose(out_o, ref_o, rtol=1e-5, atol=1e-6), (out_o, ref_o)

    print("KERNEL_OK")
</pallas_src>

<mosaic_0001>
module attributes {stable_mosaic.version = 11 : i64} {
  func.func @_bce_weighted_sum_kernel(%arg0: i32, %arg1: i32, %arg2: memref<4xf32, #tpu.memory_space<smem>>, %arg3: memref<16x128xf32, #tpu.memory_space<vmem>>, %arg4: memref<1x16x128xf32, #tpu.memory_space<vmem>>) attributes {dimension_semantics = [#tpu.dimension_semantics<parallel>, #tpu.dimension_semantics<arbitrary>], iteration_bounds = array<i64: 2, 2>, scalar_prefetch = 1 : i64, scratch_operands = 0 : i64, tpu.core_type = #tpu.core_type<tc>, window_params = [{transform_indices = @transform_0, window_bounds = array<i64: 16, 128>}, {transform_indices = @transform_1, window_bounds = array<i64: 1, 16, 128>}]} {
    %c0_i32 = arith.constant 0 : i32
    %0 = arith.cmpi eq, %arg1, %c0_i32 : i32
    %1 = arith.extui %0 : i1 to i32
    %c0_i32_0 = arith.constant 0 : i32
    %2 = arith.cmpi ne, %1, %c0_i32_0 : i32
    scf.if %2 {
      %cst_10 = arith.constant 0.000000e+00 : f32
      %24 = vector.broadcast %cst_10 : f32 to vector<1x16x128xf32>
      %c0_11 = arith.constant 0 : index
      %c0_12 = arith.constant 0 : index
      %c0_13 = arith.constant 0 : index
      %25 = vector.load %arg4[%c0_11, %c0_12, %c0_13] : memref<1x16x128xf32, #tpu.memory_space<vmem>>, vector<1x16x128xf32>
      tpu.vector_store %arg4[%c0_11, %c0_12, %c0_13], %24 {strides = array<i32>} : memref<1x16x128xf32, #tpu.memory_space<vmem>>, vector<1x16x128xf32>,
    } else {
    }
    %c0 = arith.constant 0 : index
    %c0_1 = arith.constant 0 : index
    %3 = vector.load %arg3[%c0, %c0_1] : memref<16x128xf32, #tpu.memory_space<vmem>>, vector<16x128xf32>
    %cst = arith.constant 0.000000e+00 : f32
    %4 = vector.broadcast %cst : f32 to vector<16x128xf32>
    %5 = arith.subf %4, %3 : vector<16x128xf32>
    %cst_2 = arith.constant 0.000000e+00 : f32
    %6 = vector.broadcast %cst_2 : f32 to vector<16x128xf32>
    %7 = arith.maximumf %5, %6 : vector<16x128xf32>
    %8 = math.absf %3 : vector<16x128xf32>
    %cst_3 = arith.constant 0.000000e+00 : f32
    %9 = vector.broadcast %cst_3 : f32 to vector<16x128xf32>
    %10 = arith.subf %9, %8 : vector<16x128xf32>
    %11 = math.exp %10 : vector<16x128xf32>
    %12 = math.log1p %11 : vector<16x128xf32>
    %13 = arith.addf %7, %12 : vector<16x128xf32>
    %c2_i32 = arith.constant 2 : i32
    %14 = arith.muli %arg0, %c2_i32 : i32
    %15 = arith.addi %14, %arg1 : i32
    %16 = arith.index_cast %15 : i32 to index
    %17 = memref.load %arg2[%16] : memref<4xf32, #tpu.memory_space<smem>>
    %c0_4 = arith.constant 0 : index
    %c0_5 = arith.constant 0 : index
    %c0_6 = arith.constant 0 : index
    %18 = vector.load %arg4[%c0_4, %c0_5, %c0_6] : memref<1x16x128xf32, #tpu.memory_space<vmem>>, vector<1x16x128xf32>
    %19 = vector.broadcast %17 : f32 to vector<16x128xf32>
    %20 = arith.mulf %13, %19 : vector<16x128xf32>
    %21 = vector.shape_cast %20 : vector<16x128xf32> to vector<1x16x128xf32>
    %22 = arith.addf %18, %21 : vector<1x16x128xf32>
    %c0_7 = arith.constant 0 : index
    %c0_8 = arith.constant 0 : index
    %c0_9 = arith.constant 0 : index
    %23 = vector.load %arg4[%c0_7, %c0_8, %c0_9] : memref<1x16x128xf32, #tpu.memory_space<vmem>>, vector<1x16x128xf32>
    tpu.vector_store %arg4[%c0_7, %c0_8, %c0_9], %22 {strides = array<i32>} : memref<1x16x128xf32, #tpu.memory_space<vmem>>, vector<1x16x128xf32>,
    return
  }
  func.func @transform_0(%arg0: i32, %arg1: i32, %arg2: memref<4xf32, #tpu.memory_space<smem>>) -> (i32, i32) {
    %c2_i32 = arith.constant 2 : i32
    %0 = arith.muli %arg0, %c2_i32 : i32
    %1 = arith.addi %0, %arg1 : i32
    %c0_i32 = arith.constant 0 : i32
    %c0_i32_0 = arith.constant 0 : i32
    return %1, %c0_i32 : i32, i32
  }
  func.func @transform_1(%arg0: i32, %arg1: i32, %arg2: memref<4xf32, #tpu.memory_space<smem>>) -> (i32, i32, i32) {
    %c0_i32 = arith.constant 0 : i32
    %c0_i32_0 = arith.constant 0 : i32
    %c0_i32_1 = arith.constant 0 : i32
    return %arg0, %c0_i32, %c0_i32_0 : i32, i32, i32
  }
}

</mosaic_0001>

<llo_original>
// kernel: tpu_custom_call.1
$region0: #{tpu_custom_call.1}
  #allocation0 [shape = 'u32[]', space=smem, size = 0x4, offset = 0x4, fixed_abs, tag = 'smem constant byte address 0x4 - core index']
  #allocation1 [shape = 'u32[144,128]{1,0:T(1,128)}', space=vmem, size = 0x12000, scoped, tag = 'internal scratch']
  #allocation2 [shape = 's32[1]{0}', space=sflag, size = 0x4, scoped, tag = 'scoped memory for tpu_custom_call.1']
  #allocation3 [shape = 'u8[512]{0}', space=smem, size = 0x200, scoped, tag = 'prefetched SMEM operand 0']
  %s0 = inlined_call_operand.hbm [shape: f32[4], index: 0, kind: input, shape index: {}]
  %s1 = inlined_call_operand.hbm [shape: f32[64,128], index: 1, kind: input, shape index: {}]
  %s2 = inlined_call_operand.hbm [shape: f32[2,16,128], index: 2, kind: output, shape index: {}]
  %s3 = sld [smem:[#allocation0]]
  $region45: #{tpu_custom_call.1} parent=0
    _
  %s5 = ssub.s32 1, %s3
  %s6 = scalar_select 0, %s5, %s3
  %8 = dma.hbm_to_smem %s0, 16, [#allocation3], [#allocation2]
  %9 = dma.done [#allocation2], 16
  %10 = sfence
  $region1: #{tpu_custom_call.1} parent=0
    #allocation4 [shape = 'u8[16384]{0}', space=vmem, size = 0x4000, scoped, tag = 'input window, operand 1']
    #allocation5 [shape = 's32[2]{0}', space=sflag, size = 0x8, scoped, tag = 'scoped memory for tpu_custom_call.1']
    #allocation6 [shape = 's32[2]{0}', space=sflag, size = 0x8, scoped, tag = 'scoped memory for tpu_custom_call.1']
    #allocation7 [shape = 'u8[16384]{0}', space=vmem, size = 0x4000, scoped, tag = 'output window, operand 0']
    %11 = vsyncpa [#allocation5], 0
    %s12 = scalar_lea.sflag [#allocation5], 1
    %13 = vsyncpa %s12, 0
    %14 = vsyncpa [#allocation6], 0
    %s15 = scalar_lea.sflag [#allocation6], 1
    %16 = vsyncpa %s15, 0
    loop: start=0, step=1, limit=6
    $region2: #{tpu_custom_call.1} parent=1 // loop_pre_header
      _
    $region3: #{tpu_custom_call.1} parent=1 // loop_header
      %s18 = sphi 0, %s22
      %p19 = scmp.ge.s32.totalorder %s18, 6
      %s25 = sphi 0, %s37
      %s26 = sphi 0, %s33
      %s27 = sphi 0, %s25
      %s28 = sphi 0, %s26
      %s29 = sphi 0, %s27
      %s30 = sphi 0, %s28
      %s44 = sphi 0, %s46
      %s47 = sphi 0, %s44
      %s48 = sphi 0, %s47
      %s64 = sphi 0, %s48
      %s70 = sphi 0, %s72
      %s73 = sphi 0, %s70
      %s74 = sphi 0, %s73
      %s90 = sphi 0, %s74
    $region4: #{tpu_custom_call.1} parent=1 // loop_header_branch
      %21 = sbr.rel (%p19) target = $region8
    $region5: #{tpu_custom_call.1} parent=1 // loop_body
      %s23 = ssub.s32 %s18, 1
      %s24 = ssub.s32 %s18, 2
      %s31 = sadd.s32 1, %s26
      %p32 = scmp.ge.s32.totalorder %s31, 2
      %s33 = scalar_select %p32, 0, %s31
      %s34 = sadd.s32 1, %s25
      %s35 = scalar_select %p32, %s34, %s25
      %p36 = scmp.ge.s32.totalorder %s35, 2
      %s37 = scalar_select %p36, 0, %s35
      %s38 = smul.u32 %s25, 2
      %s39 = sadd.s32 %s38, %s26
      %s40 = smul.u32 %s37, 2
      %s41 = sadd.s32 %s40, %s33
      %s42 = ssub.s32 %s39, %s41
      %p43 = scmp.eq.s32.totalorder %s42, 0
      %s45 = sadd.s32 %s44, 1
      %s46 = scalar_select %p43, %s44, %s45
      %p49 = pneg %p43
      %p50 = scmp.eq.s32.totalorder %s18, 3
      %p51 = por %p49, %p50
      %p52 = scmp.ne.s32.totalorder %s44, %s47
      %p53 = scmp.eq.s32.totalorder %s18, 0
      %p54 = por %p52, %p53
      %p55 = scmp.ne.s32.totalorder %s44, %s47
      %p56 = scmp.eq.s32.totalorder %s23, 3
      %p57 = por %p55, %p56
      %p58 = scmp.ne.s32.totalorder %s47, %s48
      %p59 = scmp.eq.s32.totalorder %s23, 0
      %p60 = por %p58, %p59
      %p61 = scmp.ne.s32.totalorder %s47, %s48
      %p62 = scmp.eq.s32.totalorder %s24, 3
      %p63 = por %p61, %p62
      %p65 = scmp.ne.s32.totalorder %s48, %s64
      %p66 = scmp.eq.s32.totalorder %s24, 0
      %p67 = por %p65, %p66
      %s68 = ssub.s32 %s25, %s37
      %p69 = scmp.eq.s32.totalorder %s68, 0
      %s71 = sadd.s32 %s70, 1
      %s72 = scalar_select %p69, %s70, %s71
      %p75 = pneg %p69
      %p76 = scmp.eq.s32.totalorder %s18, 3
      %p77 = por %p75, %p76
      %p78 = scmp.ne.s32.totalorder %s70, %s73
      %p79 = scmp.eq.s32.totalorder %s18, 0
      %p80 = por %p78, %p79
      %p81 = scmp.ne.s32.totalorder %s70, %s73
      %p82 = scmp.eq.s32.totalorder %s23, 3
      %p83 = por %p81, %p82
      %p84 = scmp.ne.s32.totalorder %s73, %s74
      %p85 = scmp.eq.s32.totalorder %s23, 0
      %p86 = por %p84, %p85
      %p87 = scmp.ne.s32.totalorder %s73, %s74
      %p88 = scmp.eq.s32.totalorder %s24, 3
      %p89 = por %p87, %p88
      %p91 = scmp.ne.s32.totalorder %s74, %s90
      %p92 = scmp.eq.s32.totalorder %s24, 0
      %p93 = por %p91, %p92
      %p94 = scmp.le.s32.totalorder 1, %s18
      %p95 = scmp.lt.s32.totalorder %s18, 5
      %p96 = pnand %p94, %p95
      %p97 = pneg %p96
      // Predicated region
      $region9: #{tpu_custom_call.1} parent=5 // pred_check
        _
      $region10: #{tpu_custom_call.1} parent=5 // pred_check_branch
        %99 = sbr.rel (%p96) target = $region12
      $region11: #{tpu_custom_call.1} parent=5 // pred_region
        %s100 = ssub.s32 %s18, 1
      $region12: #{tpu_custom_call.1} parent=5 // pred_fallthru
        _
      %p101 = scmp.lt.s32.totalorder %s18, 4
      // Predicated region
      $region13: #{tpu_custom_call.1} parent=5 // pred_check
        %p102 = pneg %p101
      $region14: #{tpu_custom_call.1} parent=5 // pred_check_branch
        %104 = sbr.rel (%p102) target = $region16
      $region15: #{tpu_custom_call.1} parent=5 // pred_region
        // Predicated region
        $region17: #{tpu_custom_call.1} parent=15 // pred_check
          %p105 = pneg %p54
        $region18: #{tpu_custom_call.1} parent=15 // pred_check_branch
          %107 = sbr.rel (%p105) target = $region20
        $region19: #{tpu_custom_call.1} parent=15 // pred_region
          %s108 = sand.u32 %s44, 1
          %s109 = scalar_lea.sflag [#allocation5], %s108
          %s110 = sand.u32 %s44, 1
          %s111 = smul.addr %s110, 16
          %s112 = scalar_lea.vmem [#allocation4], %s111
          %s113 = smul.u32 %s25, 2
          %s114 = sadd.s32 %s113, %s26
          %s115 = smul.u32 2, %s114
          %s117 = ssub.s32 256, 256
          %118 = vsyncadd %s109, %s117
          %s119 = smul.addr %s115, 128
          %s120 = scalar_lea.hbm %s1, %s119
          %s121 = sshll.u32 %s112, 4
          %s122 = int_to_ptr.vmem [resolvable:$true] %s121
          %127 = dma.hbm_to_vmem [thread:$0]  %s120, 256, %s122, %s109, 128, 128, 8
        $region20: #{tpu_custom_call.1} parent=15 // pred_fallthru
          _
      $region16: #{tpu_custom_call.1} parent=5 // pred_fallthru
        _
      %p128 = scmp.le.s32.totalorder 1, %s18
      %p129 = scmp.lt.s32.totalorder %s18, 5
      %p130 = pnand %p128, %p129
      %p131 = pneg %p130
      // Predicated region
      $region21: #{tpu_custom_call.1} parent=5 // pred_check
        _
      $region22: #{tpu_custom_call.1} parent=5 // pred_check_branch
        %133 = sbr.rel (%p130) target = $region24
      $region23: #{tpu_custom_call.1} parent=5 // pred_region
        %s134 = ssub.s32 %s18, 1
        %s135 = sand.u32 %s47, 1
        %s136 = scalar_lea.sflag [#allocation5], %s135
        %s137 = sand.u32 %s47, 1
        %s138 = smul.addr %s137, 16
        %s139 = scalar_lea.vmem [#allocation4], %s138
        // Predicated region
        $region25: #{tpu_custom_call.1} parent=23 // pred_check
          %p140 = pneg %p60
        $region26: #{tpu_custom_call.1} parent=23 // pred_check_branch
          %142 = sbr.rel (%p140) target = $region28
        $region27: #{tpu_custom_call.1} parent=23 // pred_region
          %143 = dma.done %s136, 256
        $region28: #{tpu_custom_call.1} parent=23 // pred_fallthru
          _
        %s144 = sand.u32 %s47, 1
        %s145 = scalar_lea.sflag [#allocation5], %s144
        %s146 = sand.u32 %s47, 1
        %s147 = smul.addr %s146, 16
        %s148 = scalar_lea.vmem [#allocation4], %s147
        %p149 = pneg %p60
        %p150 = pneg %p57
        %p151 = pneg %p86
        %p152 = pneg %p83
        %s153 = sand.u32 %s73, 1
        %s154 = scalar_lea.sflag [#allocation6], %s153
        %s155 = sand.u32 %s73, 1
        %s156 = smul.addr %s155, 16
        %s157 = scalar_lea.vmem [#allocation7], %s156
        %s158 = smul.u32 %s27, 2
        %s159 = sadd.s32 %s158, %s28
        %s160 = smul.u32 2, %s159
        %p161 = scmp.eq.s32.totalorder %s28, 0
        // Predicated region
        $region29: #{tpu_custom_call.1} parent=23 // pred_check
          %p162 = pneg %p161
        $region30: #{tpu_custom_call.1} parent=23 // pred_check_branch
          %164 = sbr.rel (%p162) target = $region32
        $region31: #{tpu_custom_call.1} parent=23 // pred_region
          %165 = vst [vmem:[%s157] sm:$0xff] 0.0
          %166 = vst [vmem:[%s157 + $0x8] sm:$0xff] 0.0
        $region32: #{tpu_custom_call.1} parent=23 // pred_fallthru
          _
        %v167 = vld [vmem:[%s139] sm:$0xff]
        %v168 = vld [vmem:[%s139 + $0x8] sm:$0xff]
        %v169 = vsub.f32 0.0, %v167
        %v170 = vsub.f32 0.0, %v168
        %v171 = vmax.f32 %v169, 0.0
        %v172 = vmax.f32 %v170, 0.0
        %v173 = vand.u32 2147483647, %v167
        %v174 = vand.u32 2147483647, %v168
        %v175 = vsub.f32 0.0, %v173
        %v176 = vsub.f32 0.0, %v174
        %v177 = vmul.f32 %v175, 1.442695
        %v178 = vpow.pop %v177
        %v179 = vmul.f32 %v176, 1.442695
        %v180 = vpow.pop %v179
        %v181 = vadd.f32 %v178, 1.0
        %v182 = vlog2.pop %v181
        %v183 = vmul.f32 %v182, 0.6931472
        %v184 = vmul.f32 -0.5, %v178
        %v185 = vadd.f32 %v184, 1.0
        %v186 = vmul.f32 %v185, %v178
        %v187 = vand.u32 2147483647, %v178
        %vm188 = vcmp.lt.f32.partialorder %v187, 0.0004427343
        %v189 = vsel %vm188, %v186, %v183
        %v190 = vadd.f32 %v180, 1.0
        %v191 = vlog2.pop %v190
        %v192 = vmul.f32 %v191, 0.6931472
        %v193 = vmul.f32 -0.5, %v180
        %v194 = vadd.f32 %v193, 1.0
        %v195 = vmul.f32 %v194, %v180
        %v196 = vand.u32 2147483647, %v180
        %vm197 = vcmp.lt.f32.partialorder %v196, 0.0004427343
        %v198 = vsel %vm197, %v195, %v192
        %v199 = vadd.f32 %v171, %v189
        %v200 = vadd.f32 %v172, %v198
        %s201 = smul.u32 %s27, 2
        %s202 = sadd.s32 %s201, %s28
        %s203 = sld [smem:[#allocation3 + %s202]]
        %v204 = vld [vmem:[%s157] sm:$0xff]
        %v205 = vld [vmem:[%s157 + $0x8] sm:$0xff]
        %v206 = vstv %s203
        %v207 = vmul.f32 %v199, %v206
        %v208 = vmul.f32 %v200, %v206
        %v209 = vadd.f32 %v204, %v207
        %v210 = vadd.f32 %v205, %v208
        %211 = vst [vmem:[%s157] sm:$0xff] %v209
        %212 = vst [vmem:[%s157 + $0x8] sm:$0xff] %v210
        %s213 = sand.u32 %s73, 1
        %s214 = scalar_lea.sflag [#allocation6], %s213
        %s215 = sand.u32 %s73, 1
        %s216 = smul.addr %s215, 16
        %s217 = scalar_lea.vmem [#allocation7], %s216
        // Predicated region
        $region33: #{tpu_custom_call.1} parent=23 // pred_check
          %p218 = pneg %p83
        $region34: #{tpu_custom_call.1} parent=23 // pred_check_branch
          %220 = sbr.rel (%p218) target = $region36
        $region35: #{tpu_custom_call.1} parent=23 // pred_region
          %s222 = ssub.s32 256, 256
          %223 = vsyncadd %s214, %s222
          %s224 = smul.addr %s27, 2
          %s225 = smul.addr %s224, 128
          %s226 = scalar_lea.hbm %s2, %s225
          %s227 = sshll.u32 %s217, 4
          %s228 = int_to_ptr.vmem [resolvable:$true] %s227
          %233 = dma.vmem_to_hbm [thread:$0]  %s228, 256, %s226, %s214, 128, 128, 8
        $region36: #{tpu_custom_call.1} parent=23 // pred_fallthru
          _
      $region24: #{tpu_custom_call.1} parent=5 // pred_fallthru
        _
      %p234 = scmp.le.s32.totalorder 2, %s18
      // Predicated region
      $region37: #{tpu_custom_call.1} parent=5 // pred_check
        %p235 = pneg %p234
      $region38: #{tpu_custom_call.1} parent=5 // pred_check_branch
        %237 = sbr.rel (%p235) target = $region40
      $region39: #{tpu_custom_call.1} parent=5 // pred_region
        %s238 = ssub.s32 %s18, 2
        // Predicated region
        $region41: #{tpu_custom_call.1} parent=39 // pred_check
          %p239 = pneg %p89
        $region42: #{tpu_custom_call.1} parent=39 // pred_check_branch
          %241 = sbr.rel (%p239) target = $region44
        $region43: #{tpu_custom_call.1} parent=39 // pred_region
          %s242 = sand.u32 %s74, 1
          %s243 = scalar_lea.sflag [#allocation6], %s242
          %s244 = sand.u32 %s74, 1
          %s245 = smul.addr %s244, 16
          %s246 = scalar_lea.vmem [#allocation7], %s245
          %247 = dma.done %s243, 256
        $region44: #{tpu_custom_call.1} parent=39 // pred_fallthru
          _
      $region40: #{tpu_custom_call.1} parent=5 // pred_fallthru
        _
    $region6: #{tpu_custom_call.1} parent=1 // loop_footer
      %s22 = sadd.s32 1, %s18
    $region7: #{tpu_custom_call.1} parent=1 // loop_footer_branch
      %17 = sbr.rel target = $region3
    $region8: #{tpu_custom_call.1} parent=1 // loop_exit
      _
    %248 = vsyncpa [#allocation5], 1
    %s249 = scalar_lea.sflag [#allocation5], 1
    %250 = vsyncpa %s249, 1
    %251 = vsyncpa [#allocation6], 1
    %s252 = scalar_lea.sflag [#allocation6], 1
    %253 = vsyncpa %s252, 1

</llo_original>
